<compile_context>
chip_gen: v6e
topology: v6e:2x2x1
jax: 0.10.0
libtpu: 0.0.40
codegen_flags: <defaults>
</compile_context>

<pallas_src>
import functools

import jax
import jax.numpy as jnp
from jax import lax
from jax.experimental import pallas as pl
from jax.experimental.pallas import tpu as pltpu


# ----------------------------------------------------------------------------
# Kernels
# ----------------------------------------------------------------------------
def _softplus(y):
    # numerically stable softplus: max(y, 0) + log1p(exp(-|y|))
    return jnp.maximum(y, 0.0) + jnp.log1p(jnp.exp(-jnp.abs(y)))


def _critic_kernel_single(x_ref, w1_ref, b1_ref, w2_ref, b2_ref, out_ref):
    # x: (B, fdim) f32 (no redundant cast), w1: (fdim, hidden), b1: (1, hidden)
    # w2: (1, hidden)  (PyTorch fc2.weight layout), b2: (1, 1) scalar in SMEM.
    x = x_ref[...]

    # fc1 + relu  (MXU matmul, f32 accumulate)
    h = jnp.dot(x, w1_ref[...], preferred_element_type=jnp.float32)
    h = jnp.maximum(h + b1_ref[...], 0.0)                        # (B, hidden)

    # fc2 as VPU mul + lane reduce (avoids a second N=1 MXU matmul)
    y = jnp.sum(h * w2_ref[...], axis=-1, keepdims=True)         # (B, 1)
    y = y + b2_ref[0, 0]                                         # SMEM scalar

    sp = _softplus(y)
    out_ref[...] = jnp.mean(sp, keepdims=True)                   # (1, 1)


def _critic_kernel_tiled(x_ref, w1_ref, b1_ref, w2_ref, b2_ref, out_ref,
                         acc_ref, *, total_rows, tile_rows):
    i = pl.program_id(0)

    @pl.when(i == 0)
    def _():
        acc_ref[...] = jnp.zeros_like(acc_ref)

    x = x_ref[...]                                               # (TB, fdim)
    h = jnp.dot(x, w1_ref[...], preferred_element_type=jnp.float32)
    h = jnp.maximum(h + b1_ref[...], 0.0)                        # (TB, hidden)
    y = jnp.sum(h * w2_ref[...], axis=-1, keepdims=True) + b2_ref[0, 0]
    sp = _softplus(y)                                            # (TB, 1)

    # Mask rows of the (possibly partial) last tile so padded rows never
    # contribute to the sum; the final divide uses the true batch size.
    row = lax.broadcasted_iota(jnp.int32, (tile_rows, 1), 0)
    valid = (i * tile_rows + row) < total_rows
    sp = jnp.where(valid, sp, 0.0)

    acc_ref[...] += jnp.sum(sp, keepdims=True)                   # (1, 1)

    @pl.when(i == pl.num_programs(0) - 1)
    def _():
        out_ref[...] = acc_ref[...] * (1.0 / total_rows)


# ----------------------------------------------------------------------------
# Wrappers
# ----------------------------------------------------------------------------
def _forward_single(x, w1_t, b1, w2_row, b2):
    out = pl.pallas_call(
        _critic_kernel_single,
        out_shape=jax.ShapeDtypeStruct((1, 1), jnp.float32),
        in_specs=[
            pl.BlockSpec(memory_space=pltpu.MemorySpace.VMEM),   # x
            pl.BlockSpec(memory_space=pltpu.MemorySpace.VMEM),   # w1_t
            pl.BlockSpec(memory_space=pltpu.MemorySpace.VMEM),   # b1
            pl.BlockSpec(memory_space=pltpu.MemorySpace.VMEM),   # w2_row
            pl.BlockSpec(memory_space=pltpu.MemorySpace.SMEM),   # b2 scalar
        ],
        out_specs=pl.BlockSpec(memory_space=pltpu.MemorySpace.VMEM),
    )(x, w1_t, b1, w2_row, b2)
    return out[0, 0]


def _forward_tiled(x, w1_t, b1, w2_row, b2, tile_rows):
    B, fdim = x.shape
    hidden = w1_t.shape[1]
    num_tiles = pl.cdiv(B, tile_rows)
    kernel = functools.partial(
        _critic_kernel_tiled, total_rows=B, tile_rows=tile_rows)
    out = pl.pallas_call(
        kernel,
        out_shape=jax.ShapeDtypeStruct((1, 1), jnp.float32),
        grid_spec=pltpu.PrefetchScalarGridSpec(
            num_scalar_prefetch=0,
            grid=(num_tiles,),
            in_specs=[
                pl.BlockSpec((tile_rows, fdim), lambda i: (i, 0)),   # x tile
                pl.BlockSpec((fdim, hidden), lambda i: (0, 0)),      # w1 resident
                pl.BlockSpec((1, hidden), lambda i: (0, 0)),         # b1 resident
                pl.BlockSpec((1, hidden), lambda i: (0, 0)),         # w2 resident
                pl.BlockSpec(memory_space=pltpu.MemorySpace.SMEM),   # b2 scalar
            ],
            out_specs=pl.BlockSpec((1, 1), lambda i: (0, 0)),
            scratch_shapes=[pltpu.VMEM((1, 1), jnp.float32)],
        ),
        compiler_params=pltpu.CompilerParams(
            dimension_semantics=("arbitrary",)),   # batch axis is a reduction
    )(x, w1_t, b1, w2_row, b2)
    return out[0, 0]


def critic_forward(x, w1_t, b1, w2_row, b2, *, tile_rows=None):
    """mean(softplus(fc2(relu(fc1(x))))).

    x:      (B, fdim) f32
    w1_t:   (fdim, fdim//2)  fc1.weight transposed to (in, out)
    b1:     (1, fdim//2)     fc1.bias
    w2_row: (1, fdim//2)     fc2.weight in PyTorch layout (out=1, in)
    b2:     (1, 1)           fc2.bias
    """
    B = x.shape[0]
    if tile_rows is None or tile_rows >= B:
        return _forward_single(x, w1_t, b1, w2_row, b2)
    assert tile_rows % 8 == 0, "tile_rows must be a multiple of 8 (f32 sublanes)"
    return _forward_tiled(x, w1_t, b1, w2_row, b2, tile_rows)


def init_params(key, fdim):
    """nn.Linear-style U(-1/sqrt(fan_in), 1/sqrt(fan_in)) init."""
    assert fdim % 2 == 0, "fdim must be even (fc1 output = fdim // 2)"
    hidden = fdim // 2
    k1, k2, k3, k4 = jax.random.split(key, 4)
    bound1 = 1.0 / jnp.sqrt(fdim)
    bound2 = 1.0 / jnp.sqrt(hidden)
    w1_t = jax.random.uniform(k1, (fdim, hidden), jnp.float32, -bound1, bound1)
    b1 = jax.random.uniform(k2, (1, hidden), jnp.float32, -bound1, bound1)
    w2_row = jax.random.uniform(k3, (1, hidden), jnp.float32, -bound2, bound2)
    b2 = jax.random.uniform(k4, (1, 1), jnp.float32, -bound2, bound2)
    return w1_t, b1, w2_row, b2


def reference_forward(x, w1_t, b1, w2_row, b2):
    h = jnp.maximum(x @ w1_t + b1, 0.0)
    y = h @ w2_row.T + b2
    return jnp.mean(jnp.logaddexp(y, 0.0))   # softplus


if __name__ == "__main__":
    key = jax.random.PRNGKey(0)
    k_x1, k_x2, k_p = jax.random.split(key, 3)

    fdim = 32
    w1_t, b1, w2_row, b2 = init_params(k_p, fdim)

    # 1) small batch -> single-invocation path (no grid, no pipeline overhead)
    x_small = jax.random.normal(k_x1, (8, fdim), jnp.float32)
    out_small = jax.block_until_ready(
        critic_forward(x_small, w1_t, b1, w2_row, b2))
    ref_small = reference_forward(x_small, w1_t, b1, w2_row, b2)
    assert jnp.allclose(out_small, ref_small, atol=1e-5, rtol=1e-5), \
        (out_small, ref_small)

    # 2) larger batch -> batch-tiled path (exercises resident weights,
    #    accumulator init/finalize and partial-last-tile masking)
    x_big = jax.random.normal(k_x2, (40, fdim), jnp.float32)
    out_big = jax.block_until_ready(
        critic_forward(x_big, w1_t, b1, w2_row, b2, tile_rows=16))
    ref_big = reference_forward(x_big, w1_t, b1, w2_row, b2)
    assert jnp.allclose(out_big, ref_big, atol=1e-5, rtol=1e-5), \
        (out_big, ref_big)

    print("KERNEL_OK")
</pallas_src>

<mosaic_0001>
module attributes {stable_mosaic.version = 11 : i64} {
  func.func @_critic_kernel_single(%arg0: memref<8x32xf32, #tpu.memory_space<vmem>>, %arg1: memref<32x16xf32, #tpu.memory_space<vmem>>, %arg2: memref<1x16xf32, #tpu.memory_space<vmem>>, %arg3: memref<1x16xf32, #tpu.memory_space<vmem>>, %arg4: memref<1x1xf32, #tpu.memory_space<smem>>, %arg5: memref<1x1xf32, #tpu.memory_space<vmem>>) attributes {dimension_semantics = [], scalar_prefetch = 0 : i64, scratch_operands = 0 : i64, tpu.core_type = #tpu.core_type<tc>} {
    %c0 = arith.constant 0 : index
    %c0_0 = arith.constant 0 : index
    %0 = vector.load %arg0[%c0, %c0_0] : memref<8x32xf32, #tpu.memory_space<vmem>>, vector<8x32xf32>
    %c0_1 = arith.constant 0 : index
    %c0_2 = arith.constant 0 : index
    %1 = vector.load %arg1[%c0_1, %c0_2] : memref<32x16xf32, #tpu.memory_space<vmem>>, vector<32x16xf32>
    %cst = arith.constant dense<0.000000e+00> : vector<8x16xf32>
    %2 = tpu.matmul %0, %1, %cst {dimension_numbers = #tpu.dot_dimension_numbers<[1], [0], [0], [1], [0, 0, 1, 1], [], []>} : vector<8x32xf32>, vector<32x16xf32>, vector<8x16xf32> -> vector<8x16xf32>
    %c0_3 = arith.constant 0 : index
    %c0_4 = arith.constant 0 : index
    %3 = vector.load %arg2[%c0_3, %c0_4] : memref<1x16xf32, #tpu.memory_space<vmem>>, vector<1x16xf32>
    %4 = vector.broadcast %3 : vector<1x16xf32> to vector<8x16xf32>
    %5 = arith.addf %2, %4 : vector<8x16xf32>
    %cst_5 = arith.constant 0.000000e+00 : f32
    %6 = vector.broadcast %cst_5 : f32 to vector<8x16xf32>
    %7 = arith.maximumf %5, %6 : vector<8x16xf32>
    %c0_6 = arith.constant 0 : index
    %c0_7 = arith.constant 0 : index
    %8 = vector.load %arg3[%c0_6, %c0_7] : memref<1x16xf32, #tpu.memory_space<vmem>>, vector<1x16xf32>
    %9 = vector.broadcast %8 : vector<1x16xf32> to vector<8x16xf32>
    %10 = arith.mulf %7, %9 : vector<8x16xf32>
    %cst_8 = arith.constant dense<0.000000e+00> : vector<8xf32>
    %11 = vector.multi_reduction <add>, %10, %cst_8 [1] : vector<8x16xf32> to vector<8xf32>
    %12 = vector.shape_cast %11 : vector<8xf32> to vector<8x1xf32>
    %c0_9 = arith.constant 0 : index
    %c0_10 = arith.constant 0 : index
    %13 = memref.load %arg4[%c0_9, %c0_10] : memref<1x1xf32, #tpu.memory_space<smem>>
    %14 = vector.broadcast %13 : f32 to vector<8x1xf32>
    %15 = arith.addf %12, %14 : vector<8x1xf32>
    %cst_11 = arith.constant 0.000000e+00 : f32
    %16 = vector.broadcast %cst_11 : f32 to vector<8x1xf32>
    %17 = arith.maximumf %15, %16 : vector<8x1xf32>
    %18 = math.absf %15 : vector<8x1xf32>
    %cst_12 = arith.constant 0.000000e+00 : f32
    %19 = vector.broadcast %cst_12 : f32 to vector<8x1xf32>
    %20 = arith.subf %19, %18 : vector<8x1xf32>
    %21 = math.exp %20 : vector<8x1xf32>
    %22 = math.log1p %21 : vector<8x1xf32>
    %23 = arith.addf %17, %22 : vector<8x1xf32>
    %24 = vector.shape_cast %23 : vector<8x1xf32> to vector<1x8x1xf32>
    %cst_13 = arith.constant dense<0.000000e+00> : vector<1xf32>
    %25 = vector.multi_reduction <add>, %24, %cst_13 [1, 2] : vector<1x8x1xf32> to vector<1xf32>
    %26 = vector.shape_cast %25 : vector<1xf32> to vector<1x1x1xf32>
    %27 = vector.extract %26[0, 0, 0] : f32 from vector<1x1x1xf32>
    %28 = vector.broadcast %27 : f32 to vector<1x1xf32>
    %cst_14 = arith.constant 8.000000e+00 : f32
    %29 = vector.broadcast %cst_14 : f32 to vector<1x1xf32>
    %30 = arith.divf %28, %29 : vector<1x1xf32>
    %c0_15 = arith.constant 0 : index
    %c0_16 = arith.constant 0 : index
    %31 = vector.load %arg5[%c0_15, %c0_16] : memref<1x1xf32, #tpu.memory_space<vmem>>, vector<1x1xf32>
    tpu.vector_store %arg5[%c0_15, %c0_16], %30 {strides = array<i32>} : memref<1x1xf32, #tpu.memory_space<vmem>>, vector<1x1xf32>,
    return
  }
}

</mosaic_0001>

<llo_original>
// kernel: tpu_custom_call.1
$region0: #{tpu_custom_call.1}
  #allocation0 [shape = 'u32[]', space=smem, size = 0x4, offset = 0x4, fixed_abs, tag = 'smem constant byte address 0x4 - core index']
  #allocation1 [shape = 'u32[144,128]{1,0:T(1,128)}', space=vmem, size = 0x12000, scoped, tag = 'internal scratch']
  #allocation2 [shape = 'f32[1,1]{1,0:T(1,128)S(6)}', space=smem, size = 0x200, scoped, tag = 'scoped memory for tpu_custom_call.1']
  %s0 = inlined_call_operand.vmem [shape: f32[8,32], index: 0, kind: input, shape index: {}]
  %s1 = inlined_call_operand.vmem [shape: f32[32,16], index: 1, kind: input, shape index: {}]
  %s2 = inlined_call_operand.vmem [shape: f32[1,16], index: 2, kind: input, shape index: {}]
  %s3 = inlined_call_operand.vmem [shape: f32[1,16], index: 3, kind: input, shape index: {}]
  %s4 = inlined_call_operand.<no memory space> [shape: f32[1,1], index: 4, kind: input, shape index: {}]
  %s5 = inlined_call_operand.hbm [shape: f32[1,1], index: 5, kind: output, shape index: {}]
  %s6 = sld [smem:[#allocation0]]
  $region30: #{tpu_custom_call.1} parent=0
    _
  %s8 = ssub.s32 1, %s6
  %s9 = scalar_select 0, %s8, %s6
  %10 = sst [smem:[#allocation2]] %s4
  $region1: #{tpu_custom_call.1} parent=0
    #allocation3 [shape = 'u8[512]{0}', space=vmem, size = 0x400, scoped, tag = 'output window, operand 0, single buffered']
    #allocation4 [shape = 's32[1]{0}', space=sflag, size = 0x4, scoped, tag = 'scoped memory for tpu_custom_call.1']
    %11 = vsyncpa [#allocation4], 0
    // Predicated region
    $region2: #{tpu_custom_call.1} parent=1 // pred_check
      _
    $region3: #{tpu_custom_call.1} parent=1 // pred_check_branch
      %13 = sbr.rel (0) target = $region5
    $region4: #{tpu_custom_call.1} parent=1 // pred_region
      _
    $region5: #{tpu_custom_call.1} parent=1 // pred_fallthru
      _
    // Predicated region
    $region6: #{tpu_custom_call.1} parent=1 // pred_check
      _
    $region7: #{tpu_custom_call.1} parent=1 // pred_check_branch
      %15 = sbr.rel (0) target = $region9
    $region8: #{tpu_custom_call.1} parent=1 // pred_region
      _
    $region9: #{tpu_custom_call.1} parent=1 // pred_fallthru
      _
    // Predicated region
    $region10: #{tpu_custom_call.1} parent=1 // pred_check
      _
    $region11: #{tpu_custom_call.1} parent=1 // pred_check_branch
      %17 = sbr.rel (0) target = $region13
    $region12: #{tpu_custom_call.1} parent=1 // pred_region
      _
    $region13: #{tpu_custom_call.1} parent=1 // pred_fallthru
      _
    // Predicated region
    $region14: #{tpu_custom_call.1} parent=1 // pred_check
      _
    $region15: #{tpu_custom_call.1} parent=1 // pred_check_branch
      %19 = sbr.rel (0) target = $region17
    $region16: #{tpu_custom_call.1} parent=1 // pred_region
      _
    $region17: #{tpu_custom_call.1} parent=1 // pred_fallthru
      _
    // Predicated region
    $region18: #{tpu_custom_call.1} parent=1 // pred_check
      _
    $region19: #{tpu_custom_call.1} parent=1 // pred_check_branch
      %21 = sbr.rel (0) target = $region21
    $region20: #{tpu_custom_call.1} parent=1 // pred_region
      _
    $region21: #{tpu_custom_call.1} parent=1 // pred_fallthru
      _
    %v22 = vld [vmem:[%s0] sm:$0xff]
    %v23 = vld [vmem:[%s1] sm:$0xff]
    %v24 = vld [vmem:[%s1 + $0x8] sm:$0xff]
    %v25 = vld [vmem:[%s1 + $0x10] sm:$0xff]
    %v26 = vld [vmem:[%s1 + $0x18] sm:$0xff]
    %v27 = vld [vmem:[%s2] sm:$0x1]
    %v29 = vlaneseq
    %v30 = vshrl.u32 %v29, 7
    %v31 = vsub.s32 0, %v30
    %v32 = vrot.slane %v27, %v31
    %vm34 = vcmask 261120
    %v36 = vsel %vm34, %v22, 0
    %38 = vmatprep.subr.mxu0 0.0
    %39 = vmatpush1.msra.mxu0 0.0
    %40 = vmatprep.subr.mxu0 0.0
    %41 = vmatpush1.msra.mxu0 0.0
    %42 = vmatprep.subr.mxu0 0.0
    %43 = vmatpush1.msra.mxu0 0.0
    %44 = vmatprep.subr.mxu0 0.0
    %45 = vmatpush1.msra.mxu0 0.0
    %46 = vmatprep.subr.mxu0 0.0
    %47 = vmatpush1.msra.mxu0 0.0
    %48 = vmatprep.subr.mxu0 0.0
    %49 = vmatpush1.msra.mxu0 0.0
    %50 = vmatprep.subr.mxu0 0.0
    %51 = vmatpush1.msra.mxu0 0.0
    %52 = vmatprep.subr.mxu0 0.0
    %53 = vmatpush1.msra.mxu0 0.0
    %54 = vmatprep.subr.mxu0 0.0
    %55 = vmatpush1.msra.mxu0 0.0
    %56 = vmatprep.subr.mxu0 0.0
    %57 = vmatpush1.msra.mxu0 0.0
    %58 = vmatprep.subr.mxu0 0.0
    %59 = vmatpush1.msra.mxu0 0.0
    %60 = vmatprep.subr.mxu0 0.0
    %61 = vmatpush1.msra.mxu0 0.0
    %62 = vmatprep.subr.mxu0 0.0
    %63 = vmatpush1.msra.mxu0 %v26
    %64 = vmatprep.subr.mxu0 0.0
    %65 = vmatpush1.msra.mxu0 %v25
    %66 = vmatprep.subr.mxu0 0.0
    %67 = vmatpush1.msra.mxu0 %v24
    %68 = vmatprep.subr.mxu0 0.0
    %69 = vmatpush1.msra.mxu0 %v23
    %70 = vmatprep.subr.mxu0 0.0
    %71 = vmatpush2.msra.mxu0 0.0
    %72 = vmatprep.subr.mxu0 0.0
    %73 = vmatpush2.msra.mxu0 0.0
    %74 = vmatprep.subr.mxu0 0.0
    %75 = vmatpush2.msra.mxu0 0.0
    %76 = vmatprep.subr.mxu0 0.0
    %77 = vmatpush2.msra.mxu0 0.0
    %78 = vmatprep.subr.mxu0 0.0
    %79 = vmatpush2.msra.mxu0 0.0
    %80 = vmatprep.subr.mxu0 0.0
    %81 = vmatpush2.msra.mxu0 0.0
    %82 = vmatprep.subr.mxu0 0.0
    %83 = vmatpush2.msra.mxu0 0.0
    %84 = vmatprep.subr.mxu0 0.0
    %85 = vmatpush2.msra.mxu0 0.0
    %86 = vmatprep.subr.mxu0 0.0
    %87 = vmatpush2.msra.mxu0 0.0
    %88 = vmatprep.subr.mxu0 0.0
    %89 = vmatpush2.msra.mxu0 0.0
    %90 = vmatprep.subr.mxu0 0.0
    %91 = vmatpush2.msra.mxu0 0.0
    %92 = vmatprep.subr.mxu0 0.0
    %93 = vmatpush2.msra.mxu0 0.0
    %94 = vmatprep.subr.mxu0 0.0
    %95 = vmatpush2.msra.mxu0 0.0
    %96 = vmatprep.subr.mxu0 0.0
    %97 = vmatpush2.msra.mxu0 0.0
    %98 = vmatprep.subr.mxu0 0.0
    %99 = vmatpush2.msra.mxu0 0.0
    %100 = vmatprep.subr.mxu0 0.0
    %101 = vmatpush2.msra.mxu0 0.0
    %102 = vmatprep.mubr.f32.mxu0 0.0
    %103 = vmatmul.mubr.f32.gmra.mxu0 %v36
    %v104 = vpop.f32.mrf.mxu0
    %v105 = vadd.f32 %v32, %v104
    %v106 = vpop.f32.mrf.mxu0
    %107 = vdwg.mxu0
    %v108 = vmax.f32 %v105, 0.0
    %v109 = vld [vmem:[%s3] sm:$0x1]
    %v111 = vlaneseq
    %v112 = vshrl.u32 %v111, 7
    %v113 = vsub.s32 0, %v112
    %v114 = vrot.slane %v109, %v113
    %v116 = vmul.f32 %v108, %v114
    %vm117 = vcmask 130048
    %v118 = vsel %vm117, %v116, 0.0
    %119 = vadd.xlane.f32.xlu0 %v118
    %v120 = vpop.xlane.xlu0 %119
    %s121 = sld [smem:[#allocation2]]
    %v122 = vstv %s121
    %v123 = vadd.f32 %v120, %v122
    %v124 = vmax.f32 %v123, 0.0
    %v125 = vand.u32 2147483647, %v123
    %v126 = vsub.f32 0.0, %v125
    %v127 = vmul.f32 %v126, 1.442695
    %v128 = vpow.pop %v127
    %v129 = vadd.f32 %v128, 1.0
    %v130 = vlog2.pop %v129
    %v131 = vmul.f32 %v130, 0.6931472
    %v132 = vmul.f32 -0.5, %v128
    %v133 = vadd.f32 %v132, 1.0
    %v134 = vmul.f32 %v133, %v128
    %v135 = vand.u32 2147483647, %v128
    %vm136 = vcmp.lt.f32.partialorder %v135, 0.0004427343
    %v137 = vsel %vm136, %v134, %v131
    %v138 = vadd.f32 %v124, %v137
    %vm139 = vcmask 7168
    %v140 = vsel %vm139, %v138, 0.0
    %141 = vadd.xlane.f32.xlu0 %v140
    %v142 = vpop.xlane.xlu0 %141
    %v143 = vrot.slane %v142, 4
    %v144 = vadd.f32 %v142, %v143
    %v145 = vrot.slane %v144, 2
    %v146 = vadd.f32 %v144, %v145
    %v147 = vrot.slane %v146, 1
    %v148 = vadd.f32 %v146, %v147
    %s149 = vtos %v148
    %v150 = vstv %s149
    %v151 = vrcp.pop 8.0
    %v152 = vmul.f32 %v150, %v151
    %vm153 = vcmask 0
    %154 = vst.msk [vmem:[#allocation3] sm:$0x1] %vm153, %v152
    // Predicated region
    $region22: #{tpu_custom_call.1} parent=1 // pred_check
      _
    $region23: #{tpu_custom_call.1} parent=1 // pred_check_branch
      %156 = sbr.rel (0) target = $region25
    $region24: #{tpu_custom_call.1} parent=1 // pred_region
      %s158 = ssub.s32 16, 16
      %159 = vsyncadd [#allocation4], %s158
      %s161 = sshll.u32 [#allocation3], 4
      %s162 = int_to_ptr.vmem [resolvable:$true] %s161
      %164 = dma.vmem_to_hbm [thread:$0]  %s162, 16, %s5, [#allocation4]
    $region25: #{tpu_custom_call.1} parent=1 // pred_fallthru
      _
    // Predicated region
    $region26: #{tpu_custom_call.1} parent=1 // pred_check
      _
    $region27: #{tpu_custom_call.1} parent=1 // pred_check_branch
      %166 = sbr.rel (0) target = $region29
    $region28: #{tpu_custom_call.1} parent=1 // pred_region
      %167 = dma.done [#allocation4], 16
    $region29: #{tpu_custom_call.1} parent=1 // pred_fallthru
      _
    %168 = vsyncpa [#allocation4], 1

</llo_original>
